<compile_context>
chip_gen: v7x
topology: tpu7x:2x2x1
jax: 0.10.0
libtpu: 0.0.40
codegen_flags: <defaults>
</compile_context>

<pallas_src>
import functools
import math

import jax
import jax.numpy as jnp
from jax.experimental import pallas as pl
from jax.experimental.pallas import tpu as pltpu


def _label_smoothing_kernel(inp_ref, tgt_ref, msk_ref, out_ref, *,
                            confidence, smooth_val, num_rows, row_tile,
                            mask_tail):
    inp = inp_ref[...].astype(jnp.float32)      # (TM, V) log-probs (cast after load)
    tgt = tgt_ref[...]                          # (TM, 1) int32
    msk = msk_ref[...].astype(jnp.float32)      # (TM, 1)

    tm, v = inp.shape

    # td[r, v] = confidence at the target column, smooth_val elsewhere.
    col = jax.lax.broadcasted_iota(jnp.int32, (tm, v), 1)
    coef = jnp.where(col == tgt, jnp.float32(confidence), jnp.float32(smooth_val))

    # Per-row lane reduction (XLU slot, free while VALU/DMA are busy):
    #   row_sums[r] = sum_v td[r, v] * input[r, v]
    row_sums = jnp.sum(inp * coef, axis=-1, keepdims=True)          # (TM, 1)

    # Mask is applied per-row, not per-element.
    contrib = row_sums * msk                                        # (TM, 1)

    if mask_tail:
        # Tail rows of the last (unpadded) input block are out-of-bounds
        # garbage; force them to exactly zero.  NaN-safe because the `where`
        # selects 0.0 regardless of the (possibly NaN) product.
        i = pl.program_id(0)
        rows = jax.lax.broadcasted_iota(jnp.int32, (tm, 1), 0) + i * row_tile
        contrib = jnp.where(rows < num_rows, contrib, jnp.float32(0.0))

    # One scalar partial per tile, written as a lane-dense (1, 8, 128) block
    # (all elements identical; the wrapper reads [:, 0, 0]).  No carried state
    # across grid steps -> grid axis can be "parallel".
    partial = jnp.sum(contrib)
    out_ref[...] = jnp.broadcast_to(partial, out_ref.shape)


def _round_up(x, n):
    return ((x + n - 1) // n) * n


def _vmem_capacity_bytes():
    # NOTE: assumed to report per-TensorCore VMEM (64 MiB on v7x, 128 MiB on
    # v5e/v6e).  Conservative 64 MiB fallback if the query is unavailable.
    try:
        return int(pltpu.get_tpu_info().vmem_capacity_bytes)
    except Exception:  # pragma: no cover
        return 64 << 20


def _pick_row_tile(m, v, itemsize, vmem_bytes):
    """Generation-aware row tile (multiple of 16, biased toward dividing M)."""
    if vmem_bytes >= (96 << 20):
        # 128 MiB VMEM parts (v5e / f32-v6e are HBM-bound): large tiles
        # amortize the ~0.35 us/grid-step pipeline overhead.
        target_block_bytes = min(16 << 20, vmem_bytes // 8)
    else:
        # 64 MiB per-TC (v7x) or unknown: VALU-bound there, keep tiles modest
        # and spend headroom on pipelining instead.
        target_block_bytes = min(6 << 20, vmem_bytes // 10)

    bytes_per_row = max(1, v * itemsize)
    rows = max(16, (target_block_bytes // bytes_per_row // 16) * 16)

    m_ceil = _round_up(m, 16)
    rows = min(rows, m_ceil)

    # Give both v7x TensorCores work: ensure >= 2 grid steps when possible.
    if rows >= m_ceil and m_ceil >= 32:
        rows = max(16, _round_up(m_ceil // 2, 16))

    # Prefer a row tile that divides M exactly so the in-kernel tail mask can
    # be elided (static decision); only accept tiles near the byte target.
    if m % rows != 0:
        r = rows
        lo = max(16, rows // 2)
        while r >= lo:
            if m % r == 0:
                rows = r
                break
            r -= 16
    return rows


def label_smoothing_loss(inp, target, mask, *, smoothing=0.0, padding_idx=0):
    """inp: (B, T, V) float log-probs; target: (B, T[+]) int; mask: (B, T[+]) float."""
    del padding_idx  # unused in the reference forward

    if target.ndim == 3:
        target = target.reshape(-1, target.shape[2])
        mask = mask.reshape(-1, mask.shape[2])
    t = inp.shape[1]
    target = target[:, :t]
    mask = mask[:, :t]

    v = inp.shape[-1]
    x = inp.reshape(-1, v)                            # keep caller dtype (f32/bf16)
    tgt = target.reshape(-1, 1).astype(jnp.int32)     # (M, 1)
    msk = mask.reshape(-1, 1).astype(jnp.float32)     # (M, 1)
    m = x.shape[0]

    vmem_bytes = _vmem_capacity_bytes()
    row_tile = _pick_row_tile(m, v, x.dtype.itemsize, vmem_bytes)
    num_tiles = -(-m // row_tile)
    m_pad = num_tiles * row_tile
    mask_tail = (m % row_tile) != 0
    if m_pad != m:
        # Pad only the cheap per-row columns; the big (M, V) input stays
        # unpadded (the kernel masks its out-of-range tail rows).
        pad = m_pad - m
        tgt = jnp.concatenate([tgt, jnp.zeros((pad, 1), tgt.dtype)], axis=0)
        msk = jnp.concatenate([msk, jnp.zeros((pad, 1), msk.dtype)], axis=0)

    confidence = 1.0 - float(smoothing)
    smooth_val = float(smoothing) / (v - 1) if v > 1 else 0.0
    # sum_v xlogy(td, td) is the same for every row -> fold it to a constant.
    c_const = 0.0
    if confidence > 0.0:
        c_const += confidence * math.log(confidence)
    if smooth_val > 0.0:
        c_const += (v - 1) * smooth_val * math.log(smooth_val)

    kernel = functools.partial(
        _label_smoothing_kernel,
        confidence=confidence, smooth_val=smooth_val,
        num_rows=m, row_tile=row_tile, mask_tail=mask_tail)

    # VMEM accounting:
    #  * input blocks, double-buffered, in caller dtype
    #  * one f32 block of headroom for Mosaic intermediates (bf16 upcast chain)
    #  * tgt/msk (row_tile, 1) blocks are lane-padded to (row_tile, 128) in
    #    VMEM: ~row_tile*512 bytes each, double-buffered, two arrays
    #  * (1, 8, 128) f32 output block, double-buffered
    inp_block_bytes = row_tile * v * x.dtype.itemsize
    f32_block_bytes = row_tile * v * 4
    col_block_bytes = row_tile * 128 * 4
    vmem_limit = int(2 * inp_block_bytes
                     + f32_block_bytes
                     + 2 * 2 * col_block_bytes
                     + 2 * 8 * 128 * 4
                     + (4 << 20))                     # slack
    vmem_cap = max(24 << 20, vmem_bytes - (16 << 20))  # ~48 MiB on v7x, ~112 MiB on v5e/v6e
    vmem_limit = max(16 << 20, min(vmem_limit, vmem_cap))

    partials = pl.pallas_call(
        kernel,
        out_shape=jax.ShapeDtypeStruct((num_tiles, 8, 128), jnp.float32),
        grid_spec=pltpu.PrefetchScalarGridSpec(
            num_scalar_prefetch=0,
            grid=(num_tiles,),
            in_specs=[
                pl.BlockSpec((row_tile, v), lambda i: (i, 0)),
                pl.BlockSpec((row_tile, 1), lambda i: (i, 0)),
                pl.BlockSpec((row_tile, 1), lambda i: (i, 0)),
            ],
            out_specs=pl.BlockSpec((1, 8, 128), lambda i: (i, 0, 0)),
        ),
        compiler_params=pltpu.CompilerParams(
            dimension_semantics=("parallel",),
            vmem_limit_bytes=vmem_limit),
    )(x, tgt, msk)

    # Tiny epilogue in plain JAX.
    s = jnp.sum(partials[:, 0, 0])                    # sum_r mask[r] * sum_v td*input
    mask_sum = jnp.sum(msk)                           # padding rows are exact zeros
    loss = (jnp.float32(c_const) * mask_sum - s) / mask_sum
    return loss.astype(jnp.float32)


def _reference(inp, target, mask, smoothing):
    # pure-JAX reference of the PyTorch forward
    if target.ndim == 3:
        target = target.reshape(-1, target.shape[2])
        mask = mask.reshape(-1, mask.shape[2])
    t = inp.shape[1]
    target = target[:, :t]
    mask = mask[:, :t]
    v = inp.shape[-1]
    x = inp.reshape(-1, v).astype(jnp.float32)
    tgt = target.reshape(-1)
    msk = mask.reshape(-1).astype(jnp.float32)
    conf = 1.0 - smoothing
    td = jnp.full_like(x, smoothing / (v - 1))
    td = td.at[jnp.arange(x.shape[0]), tgt].set(conf)
    xlogy = jnp.where(td > 0, td * jnp.log(jnp.where(td > 0, td, 1.0)), 0.0)
    kl = xlogy - td * x
    return (kl.sum(1) * msk).sum() / msk.sum()


if __name__ == "__main__":
    key = jax.random.PRNGKey(0)
    b, t, vocab = 2, 8, 512
    smoothing = 0.1

    k1, k2, k3 = jax.random.split(key, 3)
    logits = jax.random.normal(k1, (b, t, vocab), dtype=jnp.float32)
    log_probs = jax.nn.log_softmax(logits, axis=-1)              # module expects log-probs
    target = jax.random.randint(k2, (b, t), 0, vocab, dtype=jnp.int32)
    mask = (jax.random.uniform(k3, (b, t)) > 0.2).astype(jnp.float32)
    mask = mask.at[:, 0].set(1.0)                                # ensure mask.sum() > 0

    out = label_smoothing_loss(log_probs, target, mask, smoothing=smoothing)
    out = jax.block_until_ready(out)

    ref = _reference(log_probs, target, mask, smoothing)
    assert jnp.allclose(out, ref, rtol=1e-5, atol=1e-5), (out, ref)

    print("KERNEL_OK")
</pallas_src>

<mosaic_0001>
module attributes {stable_mosaic.version = 11 : i64} {
  func.func @_label_smoothing_kernel(%arg0: i32, %arg1: memref<16x512xf32, #tpu.memory_space<vmem>>, %arg2: memref<16x1xi32, #tpu.memory_space<vmem>>, %arg3: memref<16x1xf32, #tpu.memory_space<vmem>>, %arg4: memref<1x8x128xf32, #tpu.memory_space<vmem>>) attributes {dimension_semantics = [#tpu.dimension_semantics<parallel>], iteration_bounds = array<i64: 1>, scalar_prefetch = 0 : i64, scratch_operands = 0 : i64, tpu.core_type = #tpu.core_type<tc>, window_params = [{transform_indices = @transform_0, window_bounds = array<i64: 16, 512>}, {transform_indices = @transform_1, window_bounds = array<i64: 16, 1>}, {transform_indices = @transform_2, window_bounds = array<i64: 16, 1>}, {transform_indices = @transform_3, window_bounds = array<i64: 1, 8, 128>}]} {
    %c0 = arith.constant 0 : index
    %c0_0 = arith.constant 0 : index
    %0 = vector.load %arg1[%c0, %c0_0] : memref<16x512xf32, #tpu.memory_space<vmem>>, vector<16x512xf32>
    %c0_1 = arith.constant 0 : index
    %c0_2 = arith.constant 0 : index
    %1 = vector.load %arg2[%c0_1, %c0_2] : memref<16x1xi32, #tpu.memory_space<vmem>>, vector<16x1xi32>
    %c0_3 = arith.constant 0 : index
    %c0_4 = arith.constant 0 : index
    %2 = vector.load %arg3[%c0_3, %c0_4] : memref<16x1xf32, #tpu.memory_space<vmem>>, vector<16x1xf32>
    %3 = tpu.iota {dimensions = array<i32: 1>} : vector<16x512xi32>
    %4 = vector.broadcast %1 : vector<16x1xi32> to vector<16x512xi32>
    %5 = arith.cmpi eq, %3, %4 : vector<16x512xi32>
    %cst = arith.constant 0.899999976 : f32
    %cst_5 = arith.constant 1.95694724E-4 : f32
    %6 = vector.broadcast %cst : f32 to vector<16x512xf32>
    %7 = vector.broadcast %cst_5 : f32 to vector<16x512xf32>
    %8 = arith.select %5, %6, %7 : vector<16x512xi1>, vector<16x512xf32>
    %9 = arith.mulf %0, %8 : vector<16x512xf32>
    %cst_6 = arith.constant dense<0.000000e+00> : vector<16xf32>
    %10 = vector.multi_reduction <add>, %9, %cst_6 [1] : vector<16x512xf32> to vector<16xf32>
    %11 = vector.shape_cast %10 : vector<16xf32> to vector<16x1xf32>
    %12 = arith.mulf %11, %2 : vector<16x1xf32>
    %13 = vector.shape_cast %12 : vector<16x1xf32> to vector<1x16x1xf32>
    %cst_7 = arith.constant dense<0.000000e+00> : vector<1xf32>
    %14 = vector.multi_reduction <add>, %13, %cst_7 [1, 2] : vector<1x16x1xf32> to vector<1xf32>
    %15 = vector.shape_cast %14 : vector<1xf32> to vector<1x1x1xf32>
    %16 = vector.extract %15[0, 0, 0] : f32 from vector<1x1x1xf32>
    %17 = vector.broadcast %16 : f32 to vector<1x8x128xf32>
    %c0_8 = arith.constant 0 : index
    %c0_9 = arith.constant 0 : index
    %c0_10 = arith.constant 0 : index
    %18 = vector.load %arg4[%c0_8, %c0_9, %c0_10] : memref<1x8x128xf32, #tpu.memory_space<vmem>>, vector<1x8x128xf32>
    tpu.vector_store %arg4[%c0_8, %c0_9, %c0_10], %17 {strides = array<i32>} : memref<1x8x128xf32, #tpu.memory_space<vmem>>, vector<1x8x128xf32>,
    return
  }
  func.func @transform_0(%arg0: i32) -> (i32, i32) {
    %c0_i32 = arith.constant 0 : i32
    %c0_i32_0 = arith.constant 0 : i32
    return %arg0, %c0_i32 : i32, i32
  }
  func.func @transform_1(%arg0: i32) -> (i32, i32) {
    %c0_i32 = arith.constant 0 : i32
    %c0_i32_0 = arith.constant 0 : i32
    return %arg0, %c0_i32 : i32, i32
  }
  func.func @transform_2(%arg0: i32) -> (i32, i32) {
    %c0_i32 = arith.constant 0 : i32
    %c0_i32_0 = arith.constant 0 : i32
    return %arg0, %c0_i32 : i32, i32
  }
  func.func @transform_3(%arg0: i32) -> (i32, i32, i32) {
    %c0_i32 = arith.constant 0 : i32
    %c0_i32_0 = arith.constant 0 : i32
    %c0_i32_1 = arith.constant 0 : i32
    return %arg0, %c0_i32, %c0_i32_0 : i32, i32, i32
  }
}

</mosaic_0001>

<llo_original>
// kernel: tpu_custom_call.1
$region0: #{tpu_custom_call.1}
  #allocation0 [shape = 'u32[]', space=smem, size = 0x4, offset = 0x4, fixed_abs, tag = 'smem constant byte address 0x4 - core index']
  #allocation1 [shape = 'u32[144,128]{1,0:T(1,128)}', space=vmem, size = 0x12000, scoped, tag = 'internal scratch']
  %s0 = inlined_call_operand.hbm [shape: f32[16,512], index: 0, kind: input, shape index: {}]
  %s1 = inlined_call_operand.vmem [shape: s32[16,1], index: 1, kind: input, shape index: {}]
  %s2 = inlined_call_operand.vmem [shape: f32[16,1], index: 2, kind: input, shape index: {}]
  %s3 = inlined_call_operand.hbm [shape: f32[1,8,128], index: 3, kind: output, shape index: {}]
  %s4 = sld [smem:[#allocation0]]
  $region26: #{tpu_custom_call.1} parent=0
    _
  %s6 = ssub.s32 1, %s4
  %s7 = scalar_select 0, %s6, %s4
  $region1: #{tpu_custom_call.1} parent=0
    #allocation2 [shape = 'u8[32768]{0}', space=vmem, size = 0x8000, scoped, tag = 'input window, operand 0, single buffered']
    #allocation3 [shape = 's32[1]{0}', space=sflag, size = 0x4, scoped, tag = 'scoped memory for tpu_custom_call.1']
    #allocation4 [shape = 's32[1]{0}', space=sflag, size = 0x4, scoped, tag = 'scoped memory for tpu_custom_call.1']
    #allocation5 [shape = 'u8[4096]{0}', space=vmem, size = 0x1000, scoped, tag = 'output window, operand 0, single buffered']
    %8 = vsyncpa [#allocation3], 0
    %9 = vsyncpa [#allocation4], 0
    // Predicated region
    $region2: #{tpu_custom_call.1} parent=1 // pred_check
      _
    $region3: #{tpu_custom_call.1} parent=1 // pred_check_branch
      %11 = sbr.rel (0) target = $region5
    $region4: #{tpu_custom_call.1} parent=1 // pred_region
      %s13 = ssub.s32 1024, 1024
      %14 = vsyncadd [#allocation3], %s13
      %s15 = sshll.u32 [#allocation2], 4
      %s16 = int_to_ptr.vmem [resolvable:$true] %s15
      %21 = dma.hbm_to_vmem [thread:$0]  %s0, 1024, %s16, [#allocation3], 512, 512, 32
    $region5: #{tpu_custom_call.1} parent=1 // pred_fallthru
      _
    // Predicated region
    $region6: #{tpu_custom_call.1} parent=1 // pred_check
      _
    $region7: #{tpu_custom_call.1} parent=1 // pred_check_branch
      %23 = sbr.rel (0) target = $region9
    $region8: #{tpu_custom_call.1} parent=1 // pred_region
      _
    $region9: #{tpu_custom_call.1} parent=1 // pred_fallthru
      _
    // Predicated region
    $region10: #{tpu_custom_call.1} parent=1 // pred_check
      _
    $region11: #{tpu_custom_call.1} parent=1 // pred_check_branch
      %25 = sbr.rel (0) target = $region13
    $region12: #{tpu_custom_call.1} parent=1 // pred_region
      _
    $region13: #{tpu_custom_call.1} parent=1 // pred_fallthru
      _
    // Predicated region
    $region14: #{tpu_custom_call.1} parent=1 // pred_check
      _
    $region15: #{tpu_custom_call.1} parent=1 // pred_check_branch
      %27 = sbr.rel (0) target = $region17
    $region16: #{tpu_custom_call.1} parent=1 // pred_region
      %28 = dma.done [#allocation3], 1024
    $region17: #{tpu_custom_call.1} parent=1 // pred_fallthru
      _
    %v29 = vld [vmem:[#allocation2] sm:$0xff]
    %v30 = vld [vmem:[#allocation2 + $0x8] sm:$0xff]
    %v31 = vld [vmem:[#allocation2 + $0x10] sm:$0xff]
    %v32 = vld [vmem:[#allocation2 + $0x18] sm:$0xff]
    %v33 = vld [vmem:[#allocation2 + $0x20] sm:$0xff]
    %v34 = vld [vmem:[#allocation2 + $0x28] sm:$0xff]
    %v35 = vld [vmem:[#allocation2 + $0x30] sm:$0xff]
    %v36 = vld [vmem:[#allocation2 + $0x38] sm:$0xff]
    %v37 = vld [vmem:[%s1] sm:$0xff]
    %v38 = vld [vmem:[%s1 + $0x8] sm:$0xff]
    %v39 = vld [vmem:[%s2] sm:$0xff]
    %v40 = vld [vmem:[%s2 + $0x8] sm:$0xff]
    %v41 = vlaneseq
    %v42 = vand.u32 %v41, 127
    %v43 = vadd.s32 %v42, 128
    %v44 = vadd.s32 %v42, 256
    %v45 = vadd.s32 %v42, 384
    %46 = vset.pattern.permute.xlu0 0
    %47 = vperm.xlu0 %46, %v37
    %v48 = vpop.permute.xlu0 %47
    %49 = vset.pattern.permute.xlu0 0
    %50 = vperm.xlu0 %49, %v38
    %v51 = vpop.permute.xlu0 %50
    %vm52 = vcmp.eq.s32.totalorder %v42, %v48
    %vm53 = vcmp.eq.s32.totalorder %v43, %v48
    %vm54 = vcmp.eq.s32.totalorder %v44, %v48
    %vm55 = vcmp.eq.s32.totalorder %v45, %v48
    %vm56 = vcmp.eq.s32.totalorder %v42, %v51
    %vm57 = vcmp.eq.s32.totalorder %v43, %v51
    %vm58 = vcmp.eq.s32.totalorder %v44, %v51
    %vm59 = vcmp.eq.s32.totalorder %v45, %v51
    %v60 = vsel %vm52, 0.9, 0.00019569472
    %v61 = vsel %vm53, 0.9, 0.00019569472
    %v62 = vsel %vm54, 0.9, 0.00019569472
    %v63 = vsel %vm55, 0.9, 0.00019569472
    %v64 = vsel %vm56, 0.9, 0.00019569472
    %v65 = vsel %vm57, 0.9, 0.00019569472
    %v66 = vsel %vm58, 0.9, 0.00019569472
    %v67 = vsel %vm59, 0.9, 0.00019569472
    %v68 = vmul.f32 %v29, %v60
    %v69 = vmul.f32 %v30, %v61
    %v70 = vmul.f32 %v31, %v62
    %v71 = vmul.f32 %v32, %v63
    %v72 = vmul.f32 %v33, %v64
    %v73 = vmul.f32 %v34, %v65
    %v74 = vmul.f32 %v35, %v66
    %v75 = vmul.f32 %v36, %v67
    %v76 = vadd.f32 %v68, %v69
    %v77 = vadd.f32 %v76, %v70
    %v78 = vadd.f32 %v77, %v71
    %79 = vadd.xlane.f32.xlu0 %v78
    %v80 = vpop.xlane.xlu0 %79
    %v81 = vadd.f32 %v72, %v73
    %v82 = vadd.f32 %v81, %v74
    %v83 = vadd.f32 %v82, %v75
    %84 = vadd.xlane.f32.xlu0 %v83
    %v85 = vpop.xlane.xlu0 %84
    %v86 = vmul.f32 %v80, %v39
    %v87 = vmul.f32 %v85, %v40
    %vm88 = vcmask 7168
    %v89 = vsel %vm88, %v86, 0.0
    %v90 = vsel %vm88, %v87, 0.0
    %v91 = vadd.f32 %v89, %v90
    %92 = vadd.xlane.f32.xlu0 %v91
    %v93 = vpop.xlane.xlu0 %92
    %v94 = vrot.slane %v93, 4
    %v95 = vadd.f32 %v93, %v94
    %v96 = vrot.slane %v95, 2
    %v97 = vadd.f32 %v95, %v96
    %v98 = vrot.slane %v97, 1
    %v99 = vadd.f32 %v97, %v98
    %s100 = vtos %v99
    %v101 = vstv %s100
    %102 = vst [vmem:[#allocation5] sm:$0xff] %v101
    // Predicated region
    $region18: #{tpu_custom_call.1} parent=1 // pred_check
      _
    $region19: #{tpu_custom_call.1} parent=1 // pred_check_branch
      %104 = sbr.rel (0) target = $region21
    $region20: #{tpu_custom_call.1} parent=1 // pred_region
      %s106 = ssub.s32 128, 128
      %107 = vsyncadd [#allocation4], %s106
      %s109 = sshll.u32 [#allocation5], 4
      %s110 = int_to_ptr.vmem [resolvable:$true] %s109
      %112 = dma.vmem_to_hbm [thread:$0]  %s110, 128, %s3, [#allocation4]
    $region21: #{tpu_custom_call.1} parent=1 // pred_fallthru
      _
    // Predicated region
    $region22: #{tpu_custom_call.1} parent=1 // pred_check
      _
    $region23: #{tpu_custom_call.1} parent=1 // pred_check_branch
      %114 = sbr.rel (0) target = $region25
    $region24: #{tpu_custom_call.1} parent=1 // pred_region
      %115 = dma.done [#allocation4], 128
    $region25: #{tpu_custom_call.1} parent=1 // pred_fallthru
      _
    %116 = vsyncpa [#allocation3], 1
    %117 = vsyncpa [#allocation4], 1

</llo_original>
